<compile_context>
chip_gen: v7x
topology: tpu7x:2x2x1
jax: 0.10.0
libtpu: 0.0.40
codegen_flags: <defaults>
</compile_context>

<pallas_src>
import jax
import jax.numpy as jnp
from jax.experimental import pallas as pl
from jax.experimental.pallas import tpu as pltpu


def _leaky_relu(v, slope=0.01):
    # F.leaky_relu default negative_slope = 0.01 (weakly-typed const keeps bf16 in bf16)
    return jnp.where(v > 0, v, slope * v)


def mlp_kernel(x_ref,
               w1_ref, b1_ref,
               w2_ref, b2_ref,
               w3_ref, b3_ref,
               w4_ref, b4_ref,
               o_ref,
               xp_ref):
    # In-kernel input prep: cast (TB, 31) f32 -> bf16 and zero-pad the 32nd
    # contraction lane using a VMEM scratch (zeroed every step: with "parallel"
    # grid semantics each core owns its own scratch, so no one-time init).
    xp_ref[...] = jnp.zeros_like(xp_ref)                                  # (TB, 32) bf16
    xp_ref[:, :31] = x_ref[...].astype(jnp.bfloat16)
    x32 = xp_ref[...]                                                     # (TB, 32) bf16

    # fc1 + leaky_relu  (f32 MXU accumulation, bf16 epilogue)
    h = jnp.dot(x32, w1_ref[...], preferred_element_type=jnp.float32)    # (TB, 256) f32
    h = _leaky_relu(h.astype(jnp.bfloat16) + b1_ref[...])                 # (TB, 256) bf16

    # fc2 + leaky_relu
    h = jnp.dot(h, w2_ref[...], preferred_element_type=jnp.float32)      # (TB, 64) f32
    h = _leaky_relu(h.astype(jnp.bfloat16) + b2_ref[...])                 # (TB, 64) bf16

    # fc3 + leaky_relu
    h = jnp.dot(h, w3_ref[...], preferred_element_type=jnp.float32)      # (TB, 32) f32
    h = _leaky_relu(h.astype(jnp.bfloat16) + b3_ref[...])                 # (TB, 32) bf16

    # fc4 (no activation); output padded 30 -> 32 columns, stored f32.
    o_ref[...] = jnp.dot(h, w4_ref[...],
                         preferred_element_type=jnp.float32) + b4_ref[...]


def _round_up(a, m):
    return ((a + m - 1) // m) * m


def _choose_tb(B, max_tb=1024):
    """Batch tile: multiple of 8, >= 2 grid steps when possible (v7x megacore),
    at most max_tb rows, and ragged-batch padding bounded to < one tile."""
    if B <= 8:
        return 8
    n_tiles = max(2, pl.cdiv(B, max_tb))
    return _round_up(pl.cdiv(B, n_tiles), 8)


def prepare_params(params):
    """One-time parameter prep (do NOT call per forward): cast weights/biases to bf16,
    pad fc1 contraction dim 31 -> 32 and fc4 output dim 30 -> 32 (zero pad: exact)."""
    w1 = jnp.zeros((32, 256), jnp.bfloat16).at[:31, :].set(
        params["w1"].astype(jnp.bfloat16))
    w4 = jnp.zeros((32, 32), jnp.bfloat16).at[:, :30].set(
        params["w4"].astype(jnp.bfloat16))
    b4 = jnp.zeros((1, 32), jnp.float32).at[:, :30].set(
        params["b4"].astype(jnp.float32))
    return {
        "w1": w1,
        "b1": params["b1"].astype(jnp.bfloat16),
        "w2": params["w2"].astype(jnp.bfloat16),
        "b2": params["b2"].astype(jnp.bfloat16),
        "w3": params["w3"].astype(jnp.bfloat16),
        "b3": params["b3"].astype(jnp.bfloat16),
        "w4": w4,
        "b4": b4,  # final bias kept f32 (added to the f32 output)
    }


def mlp_forward(x, pp, *, max_tb=1024):
    """x: (B, 31) float32. pp: output of prepare_params()."""
    B = x.shape[0]
    TB = _choose_tb(B, max_tb)
    Bp = _round_up(B, TB)
    if Bp != B:
        # Only for ragged batches; padding rows are sliced off at the end.
        x = jnp.zeros((Bp, 31), x.dtype).at[:B, :].set(x)

    resident = lambda i: (0, 0)   # weights/biases: same block every step -> VMEM resident

    flops_per_row = 2 * (32 * 256 + 256 * 64 + 64 * 32 + 32 * 32)
    weight_bytes = (32 * 256 + 256 * 64 + 64 * 32 + 32 * 32) * 2 \
        + (256 + 64 + 32) * 2 + 32 * 4
    cost = pl.CostEstimate(
        flops=flops_per_row * Bp,
        transcendentals=0,
        bytes_accessed=Bp * (31 * 4 + 32 * 4) + weight_bytes,
    )

    out_padded = pl.pallas_call(
        mlp_kernel,
        out_shape=jax.ShapeDtypeStruct((Bp, 32), jnp.float32),
        grid=(Bp // TB,),
        in_specs=[
            pl.BlockSpec((TB, 31), lambda i: (i, 0)),   # x tile, pipelined over batch
            pl.BlockSpec((32, 256), resident),          # w1 (K padded 31 -> 32)
            pl.BlockSpec((1, 256), resident),           # b1 (bf16)
            pl.BlockSpec((256, 64), resident),          # w2
            pl.BlockSpec((1, 64), resident),            # b2 (bf16)
            pl.BlockSpec((64, 32), resident),           # w3
            pl.BlockSpec((1, 32), resident),            # b3 (bf16)
            pl.BlockSpec((32, 32), resident),           # w4 (N padded 30 -> 32)
            pl.BlockSpec((1, 32), resident),            # b4 (f32, padded)
        ],
        out_specs=pl.BlockSpec((TB, 32), lambda i: (i, 0)),
        scratch_shapes=[pltpu.VMEM((TB, 32), jnp.bfloat16)],   # in-kernel padded input
        compiler_params=pltpu.CompilerParams(dimension_semantics=("parallel",)),
        cost_estimate=cost,
    )(x, pp["w1"], pp["b1"], pp["w2"], pp["b2"],
      pp["w3"], pp["b3"], pp["w4"], pp["b4"])

    return out_padded[:B, :30]


def init_params(key):
    """Deterministic init mimicking nn.Linear shapes (stored transposed: (in, out))."""
    sizes = [(31, 256), (256, 64), (64, 32), (32, 30)]
    params = {}
    for i, (fan_in, fan_out) in enumerate(sizes, start=1):
        key, kw, kb = jax.random.split(key, 3)
        bound = 1.0 / jnp.sqrt(fan_in)
        params[f"w{i}"] = jax.random.uniform(
            kw, (fan_in, fan_out), jnp.float32, -bound, bound)
        params[f"b{i}"] = jax.random.uniform(
            kb, (1, fan_out), jnp.float32, -bound, bound)
    return params


def reference_forward(x, params):
    """Pure-JAX f32 reference (dropout = identity in eval mode)."""
    h = x
    for i in (1, 2, 3):
        h = _leaky_relu(h @ params[f"w{i}"] + params[f"b{i}"])
    return h @ params["w4"] + params["b4"]


if __name__ == "__main__":
    key = jax.random.PRNGKey(0)
    key, kx1, kx2 = jax.random.split(key, 3)
    params = init_params(key)
    pp = prepare_params(params)               # one-time parameter prep (hoisted)

    fwd = jax.jit(lambda xx: mlp_forward(xx, pp))

    # Small-shape smoke test (single grid step).
    B = 8
    x = jax.random.normal(kx1, (B, 31), jnp.float32)
    out = jax.block_until_ready(fwd(x))
    ref = reference_forward(x, params)
    assert out.shape == (B, 30), out.shape
    # bf16 weights/activations vs f32 reference -> loose tolerance.
    assert jnp.allclose(out, ref, atol=3e-2, rtol=3e-2), "mismatch vs reference (B=8)"

    # Multi-tile test with a ragged batch to exercise adaptive TB + padding path.
    B2 = 1037
    x2 = jax.random.normal(kx2, (B2, 31), jnp.float32)
    out2 = jax.block_until_ready(fwd(x2))
    ref2 = reference_forward(x2, params)
    assert out2.shape == (B2, 30), out2.shape
    assert jnp.allclose(out2, ref2, atol=3e-2, rtol=3e-2), "mismatch vs reference (B=1037)"

    print("KERNEL_OK")
</pallas_src>

<mosaic_0001>
module attributes {stable_mosaic.version = 11 : i64} {
  func.func @mlp_kernel(%arg0: i32, %arg1: memref<8x31xf32, #tpu.memory_space<vmem>>, %arg2: memref<32x256xbf16, #tpu.memory_space<vmem>>, %arg3: memref<1x256xbf16, #tpu.memory_space<vmem>>, %arg4: memref<256x64xbf16, #tpu.memory_space<vmem>>, %arg5: memref<1x64xbf16, #tpu.memory_space<vmem>>, %arg6: memref<64x32xbf16, #tpu.memory_space<vmem>>, %arg7: memref<1x32xbf16, #tpu.memory_space<vmem>>, %arg8: memref<32x32xbf16, #tpu.memory_space<vmem>>, %arg9: memref<1x32xf32, #tpu.memory_space<vmem>>, %arg10: memref<8x32xf32, #tpu.memory_space<vmem>>, %arg11: memref<8x32xbf16, #tpu.memory_space<vmem>>) attributes {dimension_semantics = [#tpu.dimension_semantics<parallel>], iteration_bounds = array<i64: 1>, scalar_prefetch = 0 : i64, scratch_operands = 1 : i64, tpu.core_type = #tpu.core_type<tc>, window_params = [{transform_indices = @transform_0, window_bounds = array<i64: 8, 31>}, {pipeline_mode = #tpu.pipeline_mode<synchronous>, transform_indices = @transform_1, window_bounds = array<i64: 32, 256>}, {pipeline_mode = #tpu.pipeline_mode<synchronous>, transform_indices = @transform_2, window_bounds = array<i64: 1, 256>}, {pipeline_mode = #tpu.pipeline_mode<synchronous>, transform_indices = @transform_3, window_bounds = array<i64: 256, 64>}, {pipeline_mode = #tpu.pipeline_mode<synchronous>, transform_indices = @transform_4, window_bounds = array<i64: 1, 64>}, {pipeline_mode = #tpu.pipeline_mode<synchronous>, transform_indices = @transform_5, window_bounds = array<i64: 64, 32>}, {pipeline_mode = #tpu.pipeline_mode<synchronous>, transform_indices = @transform_6, window_bounds = array<i64: 1, 32>}, {pipeline_mode = #tpu.pipeline_mode<synchronous>, transform_indices = @transform_7, window_bounds = array<i64: 32, 32>}, {pipeline_mode = #tpu.pipeline_mode<synchronous>, transform_indices = @transform_8, window_bounds = array<i64: 1, 32>}, {transform_indices = @transform_9, window_bounds = array<i64: 8, 32>}]} {
    %cst = arith.constant 0.000000e+00 : bf16
    %0 = vector.broadcast %cst : bf16 to vector<8x32xbf16>
    %c0 = arith.constant 0 : index
    %c0_0 = arith.constant 0 : index
    %1 = vector.load %arg11[%c0, %c0_0] : memref<8x32xbf16, #tpu.memory_space<vmem>>, vector<8x32xbf16>
    tpu.vector_store %arg11[%c0, %c0_0], %0 {strides = array<i32>} : memref<8x32xbf16, #tpu.memory_space<vmem>>, vector<8x32xbf16>,
    %c0_1 = arith.constant 0 : index
    %c0_2 = arith.constant 0 : index
    %2 = vector.load %arg1[%c0_1, %c0_2] : memref<8x31xf32, #tpu.memory_space<vmem>>, vector<8x31xf32>
    %3 = arith.truncf %2 : vector<8x31xf32> to vector<8x31xbf16>
    %c0_3 = arith.constant 0 : index
    %c0_4 = arith.constant 0 : index
    %4 = vector.load %arg11[%c0_3, %c0_4] : memref<8x32xbf16, #tpu.memory_space<vmem>>, vector<8x31xbf16>
    tpu.vector_store %arg11[%c0_3, %c0_4], %3 {strides = array<i32>} : memref<8x32xbf16, #tpu.memory_space<vmem>>, vector<8x31xbf16>,
    %c0_5 = arith.constant 0 : index
    %c0_6 = arith.constant 0 : index
    %5 = vector.load %arg11[%c0_5, %c0_6] : memref<8x32xbf16, #tpu.memory_space<vmem>>, vector<8x32xbf16>
    %c0_7 = arith.constant 0 : index
    %c0_8 = arith.constant 0 : index
    %6 = vector.load %arg2[%c0_7, %c0_8] : memref<32x256xbf16, #tpu.memory_space<vmem>>, vector<32x256xbf16>
    %cst_9 = arith.constant dense<0.000000e+00> : vector<8x256xf32>
    %7 = tpu.matmul %5, %6, %cst_9 {dimension_numbers = #tpu.dot_dimension_numbers<[1], [0], [0], [1], [0, 0, 1, 1], [], []>} : vector<8x32xbf16>, vector<32x256xbf16>, vector<8x256xf32> -> vector<8x256xf32>
    %8 = arith.truncf %7 : vector<8x256xf32> to vector<8x256xbf16>
    %c0_10 = arith.constant 0 : index
    %c0_11 = arith.constant 0 : index
    %9 = vector.load %arg3[%c0_10, %c0_11] : memref<1x256xbf16, #tpu.memory_space<vmem>>, vector<1x256xbf16>
    %10 = vector.broadcast %9 : vector<1x256xbf16> to vector<8x256xbf16>
    %11 = arith.addf %8, %10 : vector<8x256xbf16>
    %cst_12 = arith.constant 0.000000e+00 : bf16
    %12 = vector.broadcast %cst_12 : bf16 to vector<8x256xbf16>
    %13 = arith.cmpf ogt, %11, %12 : vector<8x256xbf16>
    %cst_13 = arith.constant 1.000980e-02 : bf16
    %14 = vector.broadcast %cst_13 : bf16 to vector<8x256xbf16>
    %15 = arith.mulf %14, %11 : vector<8x256xbf16>
    %16 = arith.select %13, %11, %15 : vector<8x256xi1>, vector<8x256xbf16>
    %c0_14 = arith.constant 0 : index
    %c0_15 = arith.constant 0 : index
    %17 = vector.load %arg4[%c0_14, %c0_15] : memref<256x64xbf16, #tpu.memory_space<vmem>>, vector<256x64xbf16>
    %cst_16 = arith.constant dense<0.000000e+00> : vector<8x64xf32>
    %18 = tpu.matmul %16, %17, %cst_16 {dimension_numbers = #tpu.dot_dimension_numbers<[1], [0], [0], [1], [0, 0, 1, 1], [], []>} : vector<8x256xbf16>, vector<256x64xbf16>, vector<8x64xf32> -> vector<8x64xf32>
    %19 = arith.truncf %18 : vector<8x64xf32> to vector<8x64xbf16>
    %c0_17 = arith.constant 0 : index
    %c0_18 = arith.constant 0 : index
    %20 = vector.load %arg5[%c0_17, %c0_18] : memref<1x64xbf16, #tpu.memory_space<vmem>>, vector<1x64xbf16>
    %21 = vector.broadcast %20 : vector<1x64xbf16> to vector<8x64xbf16>
    %22 = arith.addf %19, %21 : vector<8x64xbf16>
    %cst_19 = arith.constant 0.000000e+00 : bf16
    %23 = vector.broadcast %cst_19 : bf16 to vector<8x64xbf16>
    %24 = arith.cmpf ogt, %22, %23 : vector<8x64xbf16>
    %cst_20 = arith.constant 1.000980e-02 : bf16
    %25 = vector.broadcast %cst_20 : bf16 to vector<8x64xbf16>
    %26 = arith.mulf %25, %22 : vector<8x64xbf16>
    %27 = arith.select %24, %22, %26 : vector<8x64xi1>, vector<8x64xbf16>
    %c0_21 = arith.constant 0 : index
    %c0_22 = arith.constant 0 : index
    %28 = vector.load %arg6[%c0_21, %c0_22] : memref<64x32xbf16, #tpu.memory_space<vmem>>, vector<64x32xbf16>
    %cst_23 = arith.constant dense<0.000000e+00> : vector<8x32xf32>
    %29 = tpu.matmul %27, %28, %cst_23 {dimension_numbers = #tpu.dot_dimension_numbers<[1], [0], [0], [1], [0, 0, 1, 1], [], []>} : vector<8x64xbf16>, vector<64x32xbf16>, vector<8x32xf32> -> vector<8x32xf32>
    %30 = arith.truncf %29 : vector<8x32xf32> to vector<8x32xbf16>
    %c0_24 = arith.constant 0 : index
    %c0_25 = arith.constant 0 : index
    %31 = vector.load %arg7[%c0_24, %c0_25] : memref<1x32xbf16, #tpu.memory_space<vmem>>, vector<1x32xbf16>
    %32 = vector.broadcast %31 : vector<1x32xbf16> to vector<8x32xbf16>
    %33 = arith.addf %30, %32 : vector<8x32xbf16>
    %cst_26 = arith.constant 0.000000e+00 : bf16
    %34 = vector.broadcast %cst_26 : bf16 to vector<8x32xbf16>
    %35 = arith.cmpf ogt, %33, %34 : vector<8x32xbf16>
    %cst_27 = arith.constant 1.000980e-02 : bf16
    %36 = vector.broadcast %cst_27 : bf16 to vector<8x32xbf16>
    %37 = arith.mulf %36, %33 : vector<8x32xbf16>
    %38 = arith.select %35, %33, %37 : vector<8x32xi1>, vector<8x32xbf16>
    %c0_28 = arith.constant 0 : index
    %c0_29 = arith.constant 0 : index
    %39 = vector.load %arg8[%c0_28, %c0_29] : memref<32x32xbf16, #tpu.memory_space<vmem>>, vector<32x32xbf16>
    %cst_30 = arith.constant dense<0.000000e+00> : vector<8x32xf32>
    %40 = tpu.matmul %38, %39, %cst_30 {dimension_numbers = #tpu.dot_dimension_numbers<[1], [0], [0], [1], [0, 0, 1, 1], [], []>} : vector<8x32xbf16>, vector<32x32xbf16>, vector<8x32xf32> -> vector<8x32xf32>
    %c0_31 = arith.constant 0 : index
    %c0_32 = arith.constant 0 : index
    %41 = vector.load %arg9[%c0_31, %c0_32] : memref<1x32xf32, #tpu.memory_space<vmem>>, vector<1x32xf32>
    %42 = vector.broadcast %41 : vector<1x32xf32> to vector<8x32xf32>
    %43 = arith.addf %40, %42 : vector<8x32xf32>
    %c0_33 = arith.constant 0 : index
    %c0_34 = arith.constant 0 : index
    %44 = vector.load %arg10[%c0_33, %c0_34] : memref<8x32xf32, #tpu.memory_space<vmem>>, vector<8x32xf32>
    tpu.vector_store %arg10[%c0_33, %c0_34], %43 {strides = array<i32>} : memref<8x32xf32, #tpu.memory_space<vmem>>, vector<8x32xf32>,
    return
  }
  func.func @transform_0(%arg0: i32) -> (i32, i32) {
    %c0_i32 = arith.constant 0 : i32
    %c0_i32_0 = arith.constant 0 : i32
    return %arg0, %c0_i32 : i32, i32
  }
  func.func @transform_1(%arg0: i32) -> (i32, i32) {
    %c0_i32 = arith.constant 0 : i32
    %c0_i32_0 = arith.constant 0 : i32
    %c0_i32_1 = arith.constant 0 : i32
    return %c0_i32, %c0_i32_0 : i32, i32
  }
  func.func @transform_2(%arg0: i32) -> (i32, i32) {
    %c0_i32 = arith.constant 0 : i32
    %c0_i32_0 = arith.constant 0 : i32
    %c0_i32_1 = arith.constant 0 : i32
    return %c0_i32, %c0_i32_0 : i32, i32
  }
  func.func @transform_3(%arg0: i32) -> (i32, i32) {
    %c0_i32 = arith.constant 0 : i32
    %c0_i32_0 = arith.constant 0 : i32
    %c0_i32_1 = arith.constant 0 : i32
    return %c0_i32, %c0_i32_0 : i32, i32
  }
  func.func @transform_4(%arg0: i32) -> (i32, i32) {
    %c0_i32 = arith.constant 0 : i32
    %c0_i32_0 = arith.constant 0 : i32
    %c0_i32_1 = arith.constant 0 : i32
    return %c0_i32, %c0_i32_0 : i32, i32
  }
  func.func @transform_5(%arg0: i32) -> (i32, i32) {
    %c0_i32 = arith.constant 0 : i32
    %c0_i32_0 = arith.constant 0 : i32
    %c0_i32_1 = arith.constant 0 : i32
    return %c0_i32, %c0_i32_0 : i32, i32
  }
  func.func @transform_6(%arg0: i32) -> (i32, i32) {
    %c0_i32 = arith.constant 0 : i32
    %c0_i32_0 = arith.constant 0 : i32
    %c0_i32_1 = arith.constant 0 : i32
    return %c0_i32, %c0_i32_0 : i32, i32
  }
  func.func @transform_7(%arg0: i32) -> (i32, i32) {
    %c0_i32 = arith.constant 0 : i32
    %c0_i32_0 = arith.constant 0 : i32
    %c0_i32_1 = arith.constant 0 : i32
    return %c0_i32, %c0_i32_0 : i32, i32
  }
  func.func @transform_8(%arg0: i32) -> (i32, i32) {
    %c0_i32 = arith.constant 0 : i32
    %c0_i32_0 = arith.constant 0 : i32
    %c0_i32_1 = arith.constant 0 : i32
    return %c0_i32, %c0_i32_0 : i32, i32
  }
  func.func @transform_9(%arg0: i32) -> (i32, i32) {
    %c0_i32 = arith.constant 0 : i32
    %c0_i32_0 = arith.constant 0 : i32
    return %arg0, %c0_i32 : i32, i32
  }
}

</mosaic_0001>

<llo_original>
// kernel: _lambda_.1
$region0: #{_lambda_.1}
  #allocation0 [shape = 'u32[]', space=smem, size = 0x4, offset = 0x4, fixed_abs, tag = 'smem constant byte address 0x4 - core index']
  #allocation1 [shape = 'u32[144,128]{1,0:T(1,128)}', space=vmem, size = 0x12000, scoped, tag = 'internal scratch']
  #allocation2 [shape = 'bf16[8,32]{1,0:T(8,128)(2,1)}', space=vmem, size = 0x800, scoped, tag = 'scratch operand']
  %s0 = inlined_call_operand.vmem [shape: f32[8,31], index: 0, kind: input, shape index: {}]
  %s1 = inlined_call_operand.vmem [shape: bf16[32,256], index: 1, kind: input, shape index: {}]
  %s2 = inlined_call_operand.vmem [shape: bf16[1,256], index: 2, kind: input, shape index: {}]
  %s3 = inlined_call_operand.hbm [shape: bf16[256,64], index: 3, kind: input, shape index: {}]
  %s4 = inlined_call_operand.vmem [shape: bf16[1,64], index: 4, kind: input, shape index: {}]
  %s5 = inlined_call_operand.vmem [shape: bf16[64,32], index: 5, kind: input, shape index: {}]
  %s6 = inlined_call_operand.vmem [shape: bf16[1,32], index: 6, kind: input, shape index: {}]
  %s7 = inlined_call_operand.vmem [shape: bf16[32,32], index: 7, kind: input, shape index: {}]
  %s8 = inlined_call_operand.vmem [shape: f32[1,32], index: 8, kind: input, shape index: {}]
  %s9 = inlined_call_operand.hbm [shape: f32[8,32], index: 9, kind: output, shape index: {}]
  %s10 = sld [smem:[#allocation0]]
  $region50: #{_lambda_.1} parent=0
    _
  %s12 = ssub.s32 1, %s10
  %s13 = scalar_select 0, %s12, %s10
  $region1: #{_lambda_.1} parent=0
    #allocation3 [shape = 'u8[65536]{0}', space=vmem, size = 0x10000, scoped, tag = 'input window, operand 3, single buffered']
    #allocation4 [shape = 's32[1]{0}', space=sflag, size = 0x4, scoped, tag = 'scoped memory for _lambda_.1']
    #allocation5 [shape = 's32[1]{0}', space=sflag, size = 0x4, scoped, tag = 'scoped memory for _lambda_.1']
    #allocation6 [shape = 'u8[4096]{0}', space=vmem, size = 0x1000, scoped, tag = 'output window, operand 0, single buffered']
    %14 = vsyncpa [#allocation4], 0
    %15 = vsyncpa [#allocation5], 0
    // Predicated region
    $region2: #{_lambda_.1} parent=1 // pred_check
      _
    $region3: #{_lambda_.1} parent=1 // pred_check_branch
      %17 = sbr.rel (0) target = $region5
    $region4: #{_lambda_.1} parent=1 // pred_region
      _
    $region5: #{_lambda_.1} parent=1 // pred_fallthru
      _
    // Predicated region
    $region6: #{_lambda_.1} parent=1 // pred_check
      _
    $region7: #{_lambda_.1} parent=1 // pred_check_branch
      %19 = sbr.rel (0) target = $region9
    $region8: #{_lambda_.1} parent=1 // pred_region
      _
    $region9: #{_lambda_.1} parent=1 // pred_fallthru
      _
    // Predicated region
    $region10: #{_lambda_.1} parent=1 // pred_check
      _
    $region11: #{_lambda_.1} parent=1 // pred_check_branch
      %21 = sbr.rel (0) target = $region13
    $region12: #{_lambda_.1} parent=1 // pred_region
      _
    $region13: #{_lambda_.1} parent=1 // pred_fallthru
      _
    // Predicated region
    $region14: #{_lambda_.1} parent=1 // pred_check
      _
    $region15: #{_lambda_.1} parent=1 // pred_check_branch
      %23 = sbr.rel (0) target = $region17
    $region16: #{_lambda_.1} parent=1 // pred_region
      %s25 = ssub.s32 2048, 2048
      %26 = vsyncadd [#allocation4], %s25
      %s27 = sshll.u32 [#allocation3], 4
      %s28 = int_to_ptr.vmem [resolvable:$true] %s27
      %33 = dma.hbm_to_vmem [thread:$0]  %s3, 2048, %s28, [#allocation4], 64, 64, 4
    $region17: #{_lambda_.1} parent=1 // pred_fallthru
      _
    // Predicated region
    $region18: #{_lambda_.1} parent=1 // pred_check
      _
    $region19: #{_lambda_.1} parent=1 // pred_check_branch
      %35 = sbr.rel (0) target = $region21
    $region20: #{_lambda_.1} parent=1 // pred_region
      _
    $region21: #{_lambda_.1} parent=1 // pred_fallthru
      _
    // Predicated region
    $region22: #{_lambda_.1} parent=1 // pred_check
      _
    $region23: #{_lambda_.1} parent=1 // pred_check_branch
      %37 = sbr.rel (0) target = $region25
    $region24: #{_lambda_.1} parent=1 // pred_region
      _
    $region25: #{_lambda_.1} parent=1 // pred_fallthru
      _
    // Predicated region
    $region26: #{_lambda_.1} parent=1 // pred_check
      _
    $region27: #{_lambda_.1} parent=1 // pred_check_branch
      %39 = sbr.rel (0) target = $region29
    $region28: #{_lambda_.1} parent=1 // pred_region
      _
    $region29: #{_lambda_.1} parent=1 // pred_fallthru
      _
    // Predicated region
    $region30: #{_lambda_.1} parent=1 // pred_check
      _
    $region31: #{_lambda_.1} parent=1 // pred_check_branch
      %41 = sbr.rel (0) target = $region33
    $region32: #{_lambda_.1} parent=1 // pred_region
      _
    $region33: #{_lambda_.1} parent=1 // pred_fallthru
      _
    // Predicated region
    $region34: #{_lambda_.1} parent=1 // pred_check
      _
    $region35: #{_lambda_.1} parent=1 // pred_check_branch
      %43 = sbr.rel (0) target = $region37
    $region36: #{_lambda_.1} parent=1 // pred_region
      _
    $region37: #{_lambda_.1} parent=1 // pred_fallthru
      _
    // Predicated region
    $region38: #{_lambda_.1} parent=1 // pred_check
      _
    $region39: #{_lambda_.1} parent=1 // pred_check_branch
      %45 = sbr.rel (0) target = $region41
    $region40: #{_lambda_.1} parent=1 // pred_region
      %46 = dma.done [#allocation4], 2048
    $region41: #{_lambda_.1} parent=1 // pred_fallthru
      _
    %vm49 = vcmask 257024
    %50 = vst.msk [vmem:[#allocation2] sm:$0xf] %vm49, 0
    %v51 = vld [vmem:[%s0] sm:$0xff]
    %v52 = vpack.c.bf16 %v51, %v51
    %vm53 = vcmask 248832
    %54 = vst.msk [vmem:[#allocation2] sm:$0xf] %vm53, %v52
    %v55 = vld [vmem:[#allocation2] sm:$0xf]
    %v56 = vld [vmem:[%s1] sm:$0xff]
    %v57 = vld [vmem:[%s1 + $0x8] sm:$0xff]
    %v58 = vld [vmem:[%s1 + $0x10] sm:$0xff]
    %v59 = vld [vmem:[%s1 + $0x18] sm:$0xff]
    %v64 = vunpack.c.l.b16 %v56
    %v65 = vunpack.c.h.b16 %v56
    %v66 = vunpack.c.l.b16 %v57
    %v67 = vunpack.c.h.b16 %v57
    %v68 = vunpack.c.l.b16 %v58
    %v69 = vunpack.c.h.b16 %v58
    %v70 = vunpack.c.l.b16 %v59
    %v71 = vunpack.c.h.b16 %v59
    %v72 = vpack.c.b16 %v66, %v64
    %v73 = vpack.c.b16 %v67, %v65
    %v74 = vpack.c.b16 %v70, %v68
    %v75 = vpack.c.b16 %v71, %v69
    %vm80 = vcmask 261120
    %v82 = vsel %vm80, %v55, 0
    %84 = vmatprep.subr.bf16.mxu0 %v73
    %85 = vmatpush1.bf16.msra.mxu0 %v72
    %86 = vmatprep.subr.bf16.mxu0 %v75
    %87 = vmatpush1.bf16.msra.mxu0 %v74
    %88 = vmatprep.subr.bf16.mxu0 0
    %89 = vmatpush1.bf16.msra.mxu0 0
    %90 = vmatprep.subr.bf16.mxu0 0
    %91 = vmatpush1.bf16.msra.mxu0 0
    %92 = vmatprep.subr.bf16.mxu0 0
    %93 = vmatpush1.bf16.msra.mxu0 0
    %94 = vmatprep.subr.bf16.mxu0 0
    %95 = vmatpush1.bf16.msra.mxu0 0
    %96 = vmatprep.subr.bf16.mxu0 0
    %97 = vmatpush1.bf16.msra.mxu0 0
    %98 = vmatprep.subr.bf16.mxu0 0
    %99 = vmatpush1.bf16.msra.mxu0 0
    %100 = vmatprep.subr.bf16.mxu0 0
    %101 = vmatpush1.bf16.msra.mxu0 0
    %102 = vmatprep.subr.bf16.mxu0 0
    %103 = vmatpush1.bf16.msra.mxu0 0
    %104 = vmatprep.subr.bf16.mxu0 0
    %105 = vmatpush1.bf16.msra.mxu0 0
    %106 = vmatprep.subr.bf16.mxu0 0
    %107 = vmatpush1.bf16.msra.mxu0 0
    %108 = vmatprep.subr.bf16.mxu0 0
    %109 = vmatpush1.bf16.msra.mxu0 0
    %110 = vmatprep.subr.bf16.mxu0 0
    %111 = vmatpush1.bf16.msra.mxu0 0
    %112 = vmatprep.subr.bf16.mxu0 0
    %113 = vmatpush1.bf16.msra.mxu0 0
    %114 = vmatprep.subr.bf16.mxu0 0
    %115 = vmatpush1.bf16.msra.mxu0 0
    %116 = vmatprep.mubr.bf16.mxu0 0
    %117 = vmatmul.mubr.bf16.gmra.mrb[0].mxu0 %v82
    %v118 = vpop.f32.mrb[0].mxu0
    %v119 = vadd.f32 0.0, %v118
    %v120 = vpop.f32.mrb[0].mxu0
    %v121 = vadd.f32 0.0, %v120
    %v122 = vpop.f32.mrb[0].mxu0
    %v123 = vpop.f32.mrb[0].mxu0
    %124 = vdwg.mxu0
    %v125 = vpack.c.bf16 %v119, %v119
    %v126 = vpack.c.bf16 %v121, %v121
    %v127 = vld [vmem:[%s2] sm:$0x3]
    %v130 = vunpack.c.l.s4 1966171168
    %v131 = vunpack.c.0.s8 %v130
    %v132 = vlaneseq
    %v133 = vshrl.u32 %v132, 7
    %v134 = vsub.s32 %v131, %v133
    %v135 = vrot.slane %v127, %v134
    %v136 = vcombine.high %v135, %v135
    %v138 = vunpack.c.l.s4 1966171168
    %v139 = vunpack.c.0.s8 %v138
    %v140 = vlaneseq
    %v141 = vshrl.u32 %v140, 7
    %v142 = vsub.s32 %v139, %v141
    %v143 = vrot.slane %v135, %v142
    %v145 = vunpack.c.l.s4 1966171168
    %v146 = vunpack.c.0.s8 %v145
    %v147 = vlaneseq
    %v148 = vshrl.u32 %v147, 7
    %v149 = vsub.s32 %v146, %v148
    %v150 = vrot.slane %v136, %v149
    %v152 = vpack.i.b16 %v143, %v143
    %v154 = vlaneseq
    %v155 = vshrl.u32 %v154, 7
    %v156 = vsub.s32 0, %v155
    %v157 = vrot.slane %v152, %v156
    %v159 = vpack.i.b16 %v150, %v150
    %v161 = vlaneseq
    %v162 = vshrl.u32 %v161, 7
    %v163 = vsub.s32 0, %v162
    %v164 = vrot.slane %v159, %v163
    %v165 = vadd.bf16 %v125, %v157
    %v166 = vadd.bf16 %v126, %v164
    %vm167 = vcmp.gt.bf16.partialorder %v165, 0
    %vm168 = vcmp.gt.bf16.partialorder %v166, 0
    %v169 = vmul.bf16 %v165, 1009007652
    %v170 = vmul.bf16 %v166, 1009007652
    %v171 = vsel %vm167, %v165, %v169
    %v172 = vsel %vm168, %v166, %v170
    %v173 = vld [vmem:[#allocation3] sm:$0xf]
    %v174 = vld [vmem:[#allocation3 + $0x4] sm:$0xf]
    %v175 = vld [vmem:[#allocation3 + $0x8] sm:$0xf]
    %v176 = vld [vmem:[#allocation3 + $0xc] sm:$0xf]
    %v177 = vld [vmem:[#allocation3 + $0x10] sm:$0xf]
    %v178 = vld [vmem:[#allocation3 + $0x14] sm:$0xf]
    %v179 = vld [vmem:[#allocation3 + $0x18] sm:$0xf]
    %v180 = vld [vmem:[#allocation3 + $0x1c] sm:$0xf]
    %v181 = vld [vmem:[#allocation3 + $0x20] sm:$0xf]
    %v182 = vld [vmem:[#allocation3 + $0x24] sm:$0xf]
    %v183 = vld [vmem:[#allocation3 + $0x28] sm:$0xf]
    %v184 = vld [vmem:[#allocation3 + $0x2c] sm:$0xf]
    %v185 = vld [vmem:[#allocation3 + $0x30] sm:$0xf]
    %v186 = vld [vmem:[#allocation3 + $0x34] sm:$0xf]
    %v187 = vld [vmem:[#allocation3 + $0x38] sm:$0xf]
    %v188 = vld [vmem:[#allocation3 + $0x3c] sm:$0xf]
    %v189 = vld [vmem:[#allocation3 + $0x40] sm:$0xf]
    %v190 = vld [vmem:[#allocation3 + $0x44] sm:$0xf]
    %v191 = vld [vmem:[#allocation3 + $0x48] sm:$0xf]
    %v192 = vld [vmem:[#allocation3 + $0x4c] sm:$0xf]
    %v193 = vld [vmem:[#allocation3 + $0x50] sm:$0xf]
    %v194 = vld [vmem:[#allocation3 + $0x54] sm:$0xf]
    %v195 = vld [vmem:[#allocation3 + $0x58] sm:$0xf]
    %v196 = vld [vmem:[#allocation3 + $0x5c] sm:$0xf]
    %v197 = vld [vmem:[#allocation3 + $0x60] sm:$0xf]
    %v198 = vld [vmem:[#allocation3 + $0x64] sm:$0xf]
    %v199 = vld [vmem:[#allocation3 + $0x68] sm:$0xf]
    %v200 = vld [vmem:[#allocation3 + $0x6c] sm:$0xf]
    %v201 = vld [vmem:[#allocation3 + $0x70] sm:$0xf]
    %v202 = vld [vmem:[#allocation3 + $0x74] sm:$0xf]
    %v203 = vld [vmem:[#allocation3 + $0x78] sm:$0xf]
    %v204 = vld [vmem:[#allocation3 + $0x7c] sm:$0xf]
    %v237 = vunpack.c.l.b16 %v173
    %v238 = vunpack.c.l.b16 %v174
    %v239 = vunpack.c.l.b16 %v175
    %v240 = vunpack.c.l.b16 %v176
    %v241 = vunpack.c.l.b16 %v177
    %v242 = vunpack.c.l.b16 %v178
    %v243 = vunpack.c.l.b16 %v179
    %v244 = vunpack.c.l.b16 %v180
    %v245 = vunpack.c.l.b16 %v181
    %v246 = vunpack.c.l.b16 %v182
    %v247 = vunpack.c.l.b16 %v183
    %v248 = vunpack.c.l.b16 %v184
    %v249 = vunpack.c.l.b16 %v185
    %v250 = vunpack.c.l.b16 %v186
    %v251 = vunpack.c.l.b16 %v187
    %v252 = vunpack.c.l.b16 %v188
    %v253 = vunpack.c.l.b16 %v189
    %v254 = vunpack.c.l.b16 %v190
    %v255 = vunpack.c.l.b16 %v191
    %v256 = vunpack.c.l.b16 %v192
    %v257 = vunpack.c.l.b16 %v193
    %v258 = vunpack.c.l.b16 %v194
    %v259 = vunpack.c.l.b16 %v195
    %v260 = vunpack.c.l.b16 %v196
    %v261 = vunpack.c.l.b16 %v197
    %v262 = vunpack.c.l.b16 %v198
    %v263 = vunpack.c.l.b16 %v199
    %v264 = vunpack.c.l.b16 %v200
    %v265 = vunpack.c.l.b16 %v201
    %v266 = vunpack.c.l.b16 %v202
    %v267 = vunpack.c.l.b16 %v203
    %v268 = vunpack.c.l.b16 %v204
    %v269 = vpack.c.b16 %v238, %v237
    %v270 = vpack.c.b16 %v240, %v239
    %v271 = vpack.c.b16 %v242, %v241
    %v272 = vpack.c.b16 %v244, %v243
    %v273 = vpack.c.b16 %v246, %v245
    %v274 = vpack.c.b16 %v248, %v247
    %v275 = vpack.c.b16 %v250, %v249
    %v276 = vpack.c.b16 %v252, %v251
    %v277 = vpack.c.b16 %v254, %v253
    %v278 = vpack.c.b16 %v256, %v255
    %v279 = vpack.c.b16 %v258, %v257
    %v280 = vpack.c.b16 %v260, %v259
    %v281 = vpack.c.b16 %v262, %v261
    %v282 = vpack.c.b16 %v264, %v263
    %v283 = vpack.c.b16 %v266, %v265
    %v284 = vpack.c.b16 %v268, %v267
    %301 = vmatprep.subr.bf16.mxu0 0
    %302 = vmatpush1.bf16.msra.mxu0 %v269
    %303 = vmatprep.subr.bf16.mxu0 0
    %304 = vmatpush1.bf16.msra.mxu0 %v270
    %305 = vmatprep.subr.bf16.mxu0 0
    %306 = vmatpush1.bf16.msra.mxu0 %v271
    %307 = vmatprep.subr.bf16.mxu0 0
    %308 = vmatpush1.bf16.msra.mxu0 %v272
    %309 = vmatprep.subr.bf16.mxu0 0
    %310 = vmatpush1.bf16.msra.mxu0 %v273
    %311 = vmatprep.subr.bf16.mxu0 0
    %312 = vmatpush1.bf16.msra.mxu0 %v274
    %313 = vmatprep.subr.bf16.mxu0 0
    %314 = vmatpush1.bf16.msra.mxu0 %v275
    %315 = vmatprep.subr.bf16.mxu0 0
    %316 = vmatpush1.bf16.msra.mxu0 %v276
    %317 = vmatprep.subr.bf16.mxu0 0
    %318 = vmatpush1.bf16.msra.mxu0 %v277
    %319 = vmatprep.subr.bf16.mxu0 0
    %320 = vmatpush1.bf16.msra.mxu0 %v278
    %321 = vmatprep.subr.bf16.mxu0 0
    %322 = vmatpush1.bf16.msra.mxu0 %v279
    %323 = vmatprep.subr.bf16.mxu0 0
    %324 = vmatpush1.bf16.msra.mxu0 %v280
    %325 = vmatprep.subr.bf16.mxu0 0
    %326 = vmatpush1.bf16.msra.mxu0 %v281
    %327 = vmatprep.subr.bf16.mxu0 0
    %328 = vmatpush1.bf16.msra.mxu0 %v282
    %329 = vmatprep.subr.bf16.mxu0 0
    %330 = vmatpush1.bf16.msra.mxu0 %v283
    %331 = vmatprep.subr.bf16.mxu0 0
    %332 = vmatpush1.bf16.msra.mxu0 %v284
    %333 = vmatprep.mubr.bf16.mxu0 %v172
    %334 = vmatmul.mubr.bf16.gmra.mrb[0].mxu0 %v171
    %v335 = vpop.f32.mrb[0].mxu0
    %v336 = vadd.f32 0.0, %v335
    %v337 = vpop.f32.mrb[0].mxu0
    %v338 = vpop.f32.mrb[0].mxu0
    %v339 = vpop.f32.mrb[0].mxu0
    %340 = vdwg.mxu0
    %v341 = vpack.c.bf16 %v336, %v336
    %v342 = vld [vmem:[%s4] sm:$0x1]
    %v344 = vpack.i.b16 %v342, %v342
    %v346 = vlaneseq
    %v347 = vshrl.u32 %v346, 7
    %v348 = vsub.s32 0, %v347
    %v349 = vrot.slane %v344, %v348
    %v350 = vadd.bf16 %v341, %v349
    %vm351 = vcmp.gt.bf16.partialorder %v350, 0
    %v352 = vmul.bf16 %v350, 1009007652
    %v353 = vsel %vm351, %v350, %v352
    %v354 = vld [vmem:[%s5] sm:$0xf]
    %v355 = vld [vmem:[%s5 + $0x4] sm:$0xf]
    %v356 = vld [vmem:[%s5 + $0x8] sm:$0xf]
    %v357 = vld [vmem:[%s5 + $0xc] sm:$0xf]
    %v358 = vld [vmem:[%s5 + $0x10] sm:$0xf]
    %v359 = vld [vmem:[%s5 + $0x14] sm:$0xf]
    %v360 = vld [vmem:[%s5 + $0x18] sm:$0xf]
    %v361 = vld [vmem:[%s5 + $0x1c] sm:$0xf]
    %v370 = vunpack.c.l.b16 %v354
    %v371 = vunpack.c.l.b16 %v355
    %v372 = vunpack.c.l.b16 %v356
    %v373 = vunpack.c.l.b16 %v357
    %v374 = vunpack.c.l.b16 %v358
    %v375 = vunpack.c.l.b16 %v359
    %v376 = vunpack.c.l.b16 %v360
    %v377 = vunpack.c.l.b16 %v361
    %v378 = vpack.c.b16 %v371, %v370
    %v379 = vpack.c.b16 %v373, %v372
    %v380 = vpack.c.b16 %v375, %v374
    %v381 = vpack.c.b16 %v377, %v376
    %vm386 = vcmask 523264
    %v388 = vsel %vm386, %v353, 0
    %390 = vmatprep.subr.bf16.mxu0 0
    %391 = vmatpush1.bf16.msra.mxu0 %v378
    %392 = vmatprep.subr.bf16.mxu0 0
    %393 = vmatpush1.bf16.msra.mxu0 %v379
    %394 = vmatprep.subr.bf16.mxu0 0
    %395 = vmatpush1.bf16.msra.mxu0 %v380
    %396 = vmatprep.subr.bf16.mxu0 0
    %397 = vmatpush1.bf16.msra.mxu0 %v381
    %398 = vmatprep.subr.bf16.mxu0 0
    %399 = vmatpush1.bf16.msra.mxu0 0
    %400 = vmatprep.subr.bf16.mxu0 0
    %401 = vmatpush1.bf16.msra.mxu0 0
    %402 = vmatprep.subr.bf16.mxu0 0
    %403 = vmatpush1.bf16.msra.mxu0 0
    %404 = vmatprep.subr.bf16.mxu0 0
    %405 = vmatpush1.bf16.msra.mxu0 0
    %406 = vmatprep.subr.bf16.mxu0 0
    %407 = vmatpush1.bf16.msra.mxu0 0
    %408 = vmatprep.subr.bf16.mxu0 0
    %409 = vmatpush1.bf16.msra.mxu0 0
    %410 = vmatprep.subr.bf16.mxu0 0
    %411 = vmatpush1.bf16.msra.mxu0 0
    %412 = vmatprep.subr.bf16.mxu0 0
    %413 = vmatpush1.bf16.msra.mxu0 0
    %414 = vmatprep.subr.bf16.mxu0 0
    %415 = vmatpush1.bf16.msra.mxu0 0
    %416 = vmatprep.subr.bf16.mxu0 0
    %417 = vmatpush1.bf16.msra.mxu0 0
    %418 = vmatprep.subr.bf16.mxu0 0
    %419 = vmatpush1.bf16.msra.mxu0 0
    %420 = vmatprep.subr.bf16.mxu0 0
    %421 = vmatpush1.bf16.msra.mxu0 0
    %422 = vmatprep.mubr.bf16.mxu0 0
    %423 = vmatmul.mubr.bf16.gmra.mrb[0].mxu0 %v388
    %v424 = vpop.f32.mrb[0].mxu0
    %v425 = vadd.f32 0.0, %v424
    %v426 = vpop.f32.mrb[0].mxu0
    %v427 = vpop.f32.mrb[0].mxu0
    %v428 = vpop.f32.mrb[0].mxu0
    %429 = vdwg.mxu0
    %v430 = vpack.c.bf16 %v425, %v425
    %v431 = vld [vmem:[%s6] sm:$0x1]
    %v433 = vpack.i.b16 %v431, %v431
    %v435 = vlaneseq
    %v436 = vshrl.u32 %v435, 7
    %v437 = vsub.s32 0, %v436
    %v438 = vrot.slane %v433, %v437
    %v439 = vadd.bf16 %v430, %v438
    %vm440 = vcmp.gt.bf16.partialorder %v439, 0
    %v441 = vmul.bf16 %v439, 1009007652
    %v442 = vsel %vm440, %v439, %v441
    %v443 = vld [vmem:[%s7] sm:$0xf]
    %v444 = vld [vmem:[%s7 + $0x4] sm:$0xf]
    %v445 = vld [vmem:[%s7 + $0x8] sm:$0xf]
    %v446 = vld [vmem:[%s7 + $0xc] sm:$0xf]
    %v447 = vld [vmem:[%s8] sm:$0x1]
    %v449 = vlaneseq
    %v450 = vshrl.u32 %v449, 7
    %v451 = vsub.s32 0, %v450
    %v452 = vrot.slane %v447, %v451
    %v458 = vunpack.c.l.b16 %v443
    %v459 = vunpack.c.l.b16 %v444
    %v460 = vunpack.c.l.b16 %v445
    %v461 = vunpack.c.l.b16 %v446
    %v462 = vpack.c.b16 %v459, %v458
    %v463 = vpack.c.b16 %v461, %v460
    %v467 = vsel %vm80, %v442, 0
    %469 = vmatprep.subr.bf16.mxu0 0
    %470 = vmatpush1.bf16.msra.mxu0 %v462
    %471 = vmatprep.subr.bf16.mxu0 0
    %472 = vmatpush1.bf16.msra.mxu0 %v463
    %473 = vmatprep.subr.bf16.mxu0 0
    %474 = vmatpush1.bf16.msra.mxu0 0
    %475 = vmatprep.subr.bf16.mxu0 0
    %476 = vmatpush1.bf16.msra.mxu0 0
    %477 = vmatprep.subr.bf16.mxu0 0
    %478 = vmatpush1.bf16.msra.mxu0 0
    %479 = vmatprep.subr.bf16.mxu0 0
    %480 = vmatpush1.bf16.msra.mxu0 0
    %481 = vmatprep.subr.bf16.mxu0 0
    %482 = vmatpush1.bf16.msra.mxu0 0
    %483 = vmatprep.subr.bf16.mxu0 0
    %484 = vmatpush1.bf16.msra.mxu0 0
    %485 = vmatprep.subr.bf16.mxu0 0
    %486 = vmatpush1.bf16.msra.mxu0 0
    %487 = vmatprep.subr.bf16.mxu0 0
    %488 = vmatpush1.bf16.msra.mxu0 0
    %489 = vmatprep.subr.bf16.mxu0 0
    %490 = vmatpush1.bf16.msra.mxu0 0
    %491 = vmatprep.subr.bf16.mxu0 0
    %492 = vmatpush1.bf16.msra.mxu0 0
    %493 = vmatprep.subr.bf16.mxu0 0
    %494 = vmatpush1.bf16.msra.mxu0 0
    %495 = vmatprep.subr.bf16.mxu0 0
    %496 = vmatpush1.bf16.msra.mxu0 0
    %497 = vmatprep.subr.bf16.mxu0 0
    %498 = vmatpush1.bf16.msra.mxu0 0
    %499 = vmatprep.subr.bf16.mxu0 0
    %500 = vmatpush1.bf16.msra.mxu0 0
    %501 = vmatprep.mubr.bf16.mxu0 0
    %502 = vmatmul.mubr.bf16.gmra.mrb[0].mxu0 %v467
    %v503 = vpop.f32.mrb[0].mxu0
    %v504 = vadd.f32 %v452, %v503
    %v505 = vpop.f32.mrb[0].mxu0
    %v506 = vpop.f32.mrb[0].mxu0
    %v507 = vpop.f32.mrb[0].mxu0
    %508 = vdwg.mxu0
    %509 = vst.msk [vmem:[#allocation6] sm:$0xff] %vm80, %v504
    // Predicated region
    $region42: #{_lambda_.1} parent=1 // pred_check
      _
    $region43: #{_lambda_.1} parent=1 // pred_check_branch
      %511 = sbr.rel (0) target = $region45
    $region44: #{_lambda_.1} parent=1 // pred_region
      %s513 = ssub.s32 128, 128
      %514 = vsyncadd [#allocation5], %s513
      %s516 = sshll.u32 [#allocation6], 4
      %s517 = int_to_ptr.vmem [resolvable:$true] %s516
      %519 = dma.vmem_to_hbm [thread:$0]  %s517, 128, %s9, [#allocation5]
    $region45: #{_lambda_.1} parent=1 // pred_fallthru
      _
    // Predicated region
    $region46: #{_lambda_.1} parent=1 // pred_check
      _
    $region47: #{_lambda_.1} parent=1 // pred_check_branch
      %521 = sbr.rel (0) target = $region49
    $region48: #{_lambda_.1} parent=1 // pred_region
      %522 = dma.done [#allocation5], 128
    $region49: #{_lambda_.1} parent=1 // pred_fallthru
      _
    %523 = vsyncpa [#allocation4], 1
    %524 = vsyncpa [#allocation5], 1

</llo_original>
